<compile_context>
chip_gen: v5e
topology: v5e:2x2
jax: 0.10.0
libtpu: 0.0.40
codegen_flags: <defaults>
</compile_context>

<pallas_src>
import jax
import jax.numpy as jnp
from jax.experimental import pallas as pl
from jax.experimental.pallas import tpu as pltpu


def weight_kernel(scalars_ref, xt_ref, out_ref):
    # scalars_ref: SMEM f32[2] -> [w_scalar, sum_j exp(softmax(A))_j]
    # xt_ref     : VMEM (10, bn) tile of x^T (batch on the lane axis)
    # out_ref    : VMEM (1, bn)  output tile (batch on the lane axis)
    w_s = scalars_ref[0]                                  # scalar from SMEM
    c = scalars_ref[1]                                    # scalar from SMEM
    y = jnp.maximum(xt_ref[...] * w_s, 0.0)               # VPU: relu(x * w)
    out_ref[...] = c * jnp.sum(y, axis=0, keepdims=True)  # XLU: sublane reduce


def _pick_batch_tile(B):
    # Tile the batch (lane) axis when B is large so multiple grid steps exist
    # (and v7x's two TensorCores can each take a share); otherwise one block.
    for bn in (512, 256, 128):
        if B % bn == 0:
            return bn
    return B


def weight_forward(x, w, A):
    B, S = x.shape
    assert S == 10, "module semantics require x.shape[1] == 10"
    x = x.astype(jnp.float32)

    # softmax over A's size-1 dim is identically 1.0, so a_act == e everywhere;
    # still compute it (cheap, scalar-sized) so the result tracks A exactly.
    a_act = jnp.exp(jax.nn.softmax(A.astype(jnp.float32), axis=1))      # (25, 1)
    scalars = jnp.stack([w.reshape(()).astype(jnp.float32),
                         jnp.sum(a_act)]).astype(jnp.float32)           # (2,)

    xt = x.T                                                            # (10, B)
    bn = _pick_batch_tile(B)
    grid = (B // bn,)

    out = pl.pallas_call(
        weight_kernel,
        grid=grid,
        in_specs=[
            pl.BlockSpec(memory_space=pltpu.MemorySpace.SMEM),          # scalars
            pl.BlockSpec((S, bn), lambda i: (0, i)),                    # x^T tile
        ],
        out_specs=pl.BlockSpec((1, bn), lambda i: (0, i)),
        out_shape=jax.ShapeDtypeStruct((1, B), jnp.float32),
        compiler_params=pltpu.CompilerParams(
            dimension_semantics=("parallel",)),
    )(scalars, xt)
    return out[0, :]                                                    # (B,)


def weight_forward_ref(x, w, A):
    # pure-JAX reference with identical semantics to the torch module
    a_act = jnp.exp(jax.nn.softmax(A, axis=1))
    xe = x.reshape(-1, 1)
    W = w @ a_act.T
    feats = jax.nn.relu(xe @ W)
    feats = feats.sum(-1).reshape(x.shape[0], 10).sum(-1)
    return feats


if __name__ == "__main__":
    key = jax.random.PRNGKey(0)
    kx, kw, ka = jax.random.split(key, 3)

    B = 8
    x = jax.random.normal(kx, (B, 10), dtype=jnp.float32)
    # deterministic stand-ins for torch.manual_seed(696) parameters
    w = jax.random.normal(kw, (1, 1), dtype=jnp.float32)   # Weight.w
    A = jax.random.normal(ka, (25, 1), dtype=jnp.float32)  # the "A" argument

    out = weight_forward(x, w, A)
    jax.block_until_ready(out)

    ref = weight_forward_ref(x, w, A)
    assert out.shape == (B,)
    assert jnp.allclose(out, ref, rtol=1e-5, atol=1e-5), (out, ref)

    print("KERNEL_OK")
</pallas_src>

<mosaic_0001>
module attributes {stable_mosaic.version = 11 : i64} {
  func.func @weight_kernel(%arg0: i32, %arg1: memref<2xf32, #tpu.memory_space<smem>>, %arg2: memref<10x8xf32, #tpu.memory_space<vmem>>, %arg3: memref<1x8xf32, #tpu.memory_space<vmem>>) attributes {dimension_semantics = [#tpu.dimension_semantics<parallel>], iteration_bounds = array<i64: 1>, scalar_prefetch = 0 : i64, scratch_operands = 0 : i64, tpu.core_type = #tpu.core_type<tc>, window_params = [{transform_indices = @transform_0, window_bounds = array<i64: 2>}, {transform_indices = @transform_1, window_bounds = array<i64: 10, 8>}, {transform_indices = @transform_2, window_bounds = array<i64: 1, 8>}]} {
    %c0 = arith.constant 0 : index
    %0 = memref.load %arg1[%c0] : memref<2xf32, #tpu.memory_space<smem>>
    %c1 = arith.constant 1 : index
    %1 = memref.load %arg1[%c1] : memref<2xf32, #tpu.memory_space<smem>>
    %c0_0 = arith.constant 0 : index
    %c0_1 = arith.constant 0 : index
    %2 = vector.load %arg2[%c0_0, %c0_1] : memref<10x8xf32, #tpu.memory_space<vmem>>, vector<10x8xf32>
    %3 = vector.broadcast %0 : f32 to vector<10x8xf32>
    %4 = arith.mulf %2, %3 : vector<10x8xf32>
    %cst = arith.constant 0.000000e+00 : f32
    %5 = vector.broadcast %cst : f32 to vector<10x8xf32>
    %6 = arith.maximumf %4, %5 : vector<10x8xf32>
    %cst_2 = arith.constant dense<0.000000e+00> : vector<8xf32>
    %7 = vector.multi_reduction <add>, %6, %cst_2 [0] : vector<10x8xf32> to vector<8xf32>
    %8 = vector.shape_cast %7 : vector<8xf32> to vector<1x8xf32>
    %9 = vector.broadcast %1 : f32 to vector<1x8xf32>
    %10 = arith.mulf %9, %8 : vector<1x8xf32>
    %c0_3 = arith.constant 0 : index
    %c0_4 = arith.constant 0 : index
    %11 = vector.load %arg3[%c0_3, %c0_4] : memref<1x8xf32, #tpu.memory_space<vmem>>, vector<1x8xf32>
    tpu.vector_store %arg3[%c0_3, %c0_4], %10 {strides = array<i32>} : memref<1x8xf32, #tpu.memory_space<vmem>>, vector<1x8xf32>,
    return
  }
  func.func @transform_0(%arg0: i32) -> i32 {
    %c0_i32 = arith.constant 0 : i32
    %c0_i32_0 = arith.constant 0 : i32
    return %c0_i32 : i32
  }
  func.func @transform_1(%arg0: i32) -> (i32, i32) {
    %c0_i32 = arith.constant 0 : i32
    %c0_i32_0 = arith.constant 0 : i32
    return %c0_i32, %arg0 : i32, i32
  }
  func.func @transform_2(%arg0: i32) -> (i32, i32) {
    %c0_i32 = arith.constant 0 : i32
    %c0_i32_0 = arith.constant 0 : i32
    return %c0_i32, %arg0 : i32, i32
  }
}

</mosaic_0001>

<llo_original>
// kernel: tpu_custom_call.1
$region0: #{tpu_custom_call.1}
  #allocation0 [shape = 'u32[]', space=smem, size = 0x4, offset = 0x4, fixed_abs, tag = 'smem constant byte address 0x4 - core index']
  #allocation1 [shape = 'u32[72,128]{1,0:T(1,128)}', space=vmem, size = 0x9000, scoped, tag = 'internal scratch']
  %s0 = inlined_call_operand.vmem [shape: f32[2], index: 0, kind: input, shape index: {}]
  %s1 = inlined_call_operand.vmem [shape: f32[10,8], index: 1, kind: input, shape index: {}]
  %s2 = inlined_call_operand.hbm [shape: f32[1,8], index: 2, kind: output, shape index: {}]
  %s3 = sld [smem:[#allocation0]]
  $region22: #{tpu_custom_call.1} parent=0
    _
  %s5 = ssub.s32 1, %s3
  %s6 = scalar_select 0, %s5, %s3
  $region1: #{tpu_custom_call.1} parent=0
    #allocation2 [shape = 'u8[512]{0}', space=smem, size = 0x200, scoped, tag = 'input window, operand 0, single buffered']
    #allocation3 [shape = 's32[1]{0}', space=sflag, size = 0x4, scoped, tag = 'scoped memory for tpu_custom_call.1']
    #allocation4 [shape = 's32[1]{0}', space=sflag, size = 0x4, scoped, tag = 'scoped memory for tpu_custom_call.1']
    #allocation5 [shape = 'u8[512]{0}', space=vmem, size = 0x400, scoped, tag = 'output window, operand 0, single buffered']
    %7 = vsyncpa [#allocation4], 0
    %8 = vsyncpa [#allocation3], 0
    // Predicated region
    $region2: #{tpu_custom_call.1} parent=1 // pred_check
      _
    $region3: #{tpu_custom_call.1} parent=1 // pred_check_branch
      %10 = sbr.rel (0) target = $region5
    $region4: #{tpu_custom_call.1} parent=1 // pred_region
      %12 = vsyncadd [#allocation4], 0
      %s14 = sshll.u32 %s0, 4
      %s15 = int_to_ptr.vmem [resolvable:$true] %s14
      %17 = dma.vmem_to_smem %s15, 16, [#allocation2], [#allocation4]
    $region5: #{tpu_custom_call.1} parent=1 // pred_fallthru
      _
    // Predicated region
    $region6: #{tpu_custom_call.1} parent=1 // pred_check
      _
    $region7: #{tpu_custom_call.1} parent=1 // pred_check_branch
      %19 = sbr.rel (0) target = $region9
    $region8: #{tpu_custom_call.1} parent=1 // pred_region
      _
    $region9: #{tpu_custom_call.1} parent=1 // pred_fallthru
      _
    // Predicated region
    $region10: #{tpu_custom_call.1} parent=1 // pred_check
      _
    $region11: #{tpu_custom_call.1} parent=1 // pred_check_branch
      %21 = sbr.rel (0) target = $region13
    $region12: #{tpu_custom_call.1} parent=1 // pred_region
      %23 = dma.done [#allocation4], 16
    $region13: #{tpu_custom_call.1} parent=1 // pred_fallthru
      _
    %24 = sfence
    %s25 = sld [smem:[#allocation2]]
    %s26 = sld [smem:[#allocation2 + $0x1]]
    %v27 = vld [vmem:[%s1] sm:$0xff]
    %v28 = vld [vmem:[%s1 + $0x8] sm:$0x3]
    %v29 = vstv %s25
    %v30 = vmul.f32 %v27, %v29
    %v31 = vmul.f32 %v28, %v29
    %v32 = vmax.f32 %v30, 0.0
    %v33 = vmax.f32 %v31, 0.0
    %vm34 = vcmask 64512
    %v35 = vsel %vm34, %v32, 0.0
    %vm36 = vcmask 58368
    %v37 = vsel %vm36, %v33, 0.0
    %v38 = vadd.f32 %v35, %v37
    %v39 = vrot.slane %v38, 4
    %v40 = vadd.f32 %v38, %v39
    %v41 = vrot.slane %v40, 2
    %v42 = vadd.f32 %v40, %v41
    %v43 = vrot.slane %v42, 1
    %v44 = vadd.f32 %v42, %v43
    %v45 = vstv %s26
    %v46 = vmul.f32 %v45, %v44
    %vm47 = vcmask 57344
    %48 = vst.msk [vmem:[#allocation5] sm:$0x1] %vm47, %v46
    // Predicated region
    $region14: #{tpu_custom_call.1} parent=1 // pred_check
      _
    $region15: #{tpu_custom_call.1} parent=1 // pred_check_branch
      %50 = sbr.rel (0) target = $region17
    $region16: #{tpu_custom_call.1} parent=1 // pred_region
      %52 = vsyncadd [#allocation3], 0
      %s54 = sshll.u32 [#allocation5], 4
      %s55 = int_to_ptr.vmem [resolvable:$true] %s54
      %s56 = sshll.u32 %s2, 4
      %s57 = int_to_ptr.hbm [resolvable:$true] %s56
      %59 = dma.vmem_to_hbm [thread:$0]  %s55, 16, %s57, [#allocation3]
    $region17: #{tpu_custom_call.1} parent=1 // pred_fallthru
      _
    // Predicated region
    $region18: #{tpu_custom_call.1} parent=1 // pred_check
      _
    $region19: #{tpu_custom_call.1} parent=1 // pred_check_branch
      %61 = sbr.rel (0) target = $region21
    $region20: #{tpu_custom_call.1} parent=1 // pred_region
      %63 = dma.done [#allocation3], 16
    $region21: #{tpu_custom_call.1} parent=1 // pred_fallthru
      _
    %64 = vsyncpa [#allocation3], 1
    %65 = vsyncpa [#allocation4], 1

</llo_original>
